<compile_context>
chip_gen: v6e
topology: v6e:2x2x1
jax: 0.10.0
libtpu: 0.0.40
codegen_flags: <defaults>
</compile_context>

<pallas_src>
import jax
import jax.numpy as jnp
from jax.experimental import pallas as pl
from jax.experimental.pallas import tpu as pltpu


_LANE = 128
_VMEM_TILE_BUDGET = 8 << 20  # bytes of (double-buffered) tiles per grid step


def _pick_batch_block(n, bytes_per_image, vmem_budget=_VMEM_TILE_BUDGET):
    """Largest divisor of n whose per-step tiles fit the VMEM budget, while
    keeping >= 2 grid steps whenever n >= 2 (megacore sharding on v7x)."""
    max_nb = max(1, min(n, vmem_budget // max(bytes_per_image, 1)))
    best = 1
    for nb in range(1, max_nb + 1):
        if n % nb == 0 and (n < 2 or n // nb >= 2):
            best = nb
    return best


def conv2d_valid_pallas(x, w, b):
    """stride=1, padding=0 2-D convolution, NCHW input / OIHW weights."""
    N, Cin, H, W = x.shape
    Cout, Cin_w, KH, KW = w.shape
    assert Cin == Cin_w
    OH, OW = H - KH + 1, W - KW + 1
    OHW = OH * OW
    K = KH * KW * Cin
    L_pad = ((OHW + _LANE - 1) // _LANE) * _LANE  # per-image lane-padded width

    # ---- wrapper-side layout plumbing (one-time, outside the kernel) ----
    # im2col patch matrix, row order (kh, kw, cin), lane order (n, oh, ow):
    #   patches[(kh*KW+kw)*Cin + c, n*L_pad + oh*OW + ow] = x[n, c, oh+kh, ow+kw]
    taps = []
    for kh in range(KH):
        for kw in range(KW):
            taps.append(x[:, :, kh:kh + OH, kw:kw + OW])   # (N, Cin, OH, OW)
    patches = jnp.stack(taps, axis=1)                      # (N, KH*KW, Cin, OH, OW)
    patches = patches.reshape(N, K, OHW)
    patches = jnp.pad(patches, ((0, 0), (0, 0), (0, L_pad - OHW)))
    patches = jnp.transpose(patches, (1, 0, 2)).reshape(K, N * L_pad)

    # weights: (Cout, Cin, KH, KW) -> (Cout, KH*KW*Cin), row order (kh, kw, c)
    w_mat = jnp.transpose(w, (0, 2, 3, 1)).reshape(Cout, K).astype(jnp.float32)
    b_col = b.reshape(Cout, 1).astype(jnp.float32)

    # Per-image, double-buffered f32 tile bytes (patch tile + output tile).
    bytes_per_image = 2 * (K + Cout) * L_pad * 4
    NB = _pick_batch_block(N, bytes_per_image)
    G = N // NB                 # grid steps (>= 2 whenever N >= 2)
    TL = NB * L_pad             # lane-dense tile width, multiple of 128

    def kernel(p_ref, w_ref, b_ref, o_ref):
        # p_ref: (K, TL)   w_ref: (Cout, K)   b_ref: (Cout, 1)   o_ref: (Cout, TL)
        acc = jax.lax.dot_general(
            w_ref[...], p_ref[...],
            dimension_numbers=(((1,), (0,)), ((), ())),
            preferred_element_type=jnp.float32)
        o_ref[...] = (acc + b_ref[...]).astype(o_ref.dtype)

    out = pl.pallas_call(
        kernel,
        out_shape=jax.ShapeDtypeStruct((Cout, N * L_pad), x.dtype),
        grid=(G,),
        in_specs=[
            pl.BlockSpec((K, TL), lambda g: (0, g)),
            pl.BlockSpec((Cout, K), lambda g: (0, 0)),
            pl.BlockSpec((Cout, 1), lambda g: (0, 0)),
        ],
        out_specs=pl.BlockSpec((Cout, TL), lambda g: (0, g)),
        compiler_params=pltpu.CompilerParams(
            dimension_semantics=("parallel",),
            vmem_limit_bytes=32 << 20),
    )(patches, w_mat, b_col)

    # Strip per-image lane padding and restore NCHW (wrapper-side plumbing).
    y = out.reshape(Cout, N, L_pad)[:, :, :OHW]
    y = jnp.transpose(y, (1, 0, 2)).reshape(N, Cout, OH, OW)
    return y


class SJPallas:
    """JAX/Pallas port of torch module SJ (single Conv2d(3, 6, 3))."""

    def __init__(self, key):
        kw_key, kb_key = jax.random.split(key)
        cin, cout, k = 3, 6, 3
        # Deterministic init mimicking PyTorch's kaiming-uniform bounds.
        fan_in = cin * k * k
        bound = 1.0 / jnp.sqrt(fan_in)
        self.weight = jax.random.uniform(
            kw_key, (cout, cin, k, k), jnp.float32, -bound, bound)
        self.bias = jax.random.uniform(
            kb_key, (cout,), jnp.float32, -bound, bound)

    def __call__(self, x):
        return conv2d_valid_pallas(x, self.weight, self.bias)


if __name__ == "__main__":
    key = jax.random.PRNGKey(0)
    k_param, k_x = jax.random.split(key)

    model = SJPallas(k_param)
    x = jax.random.normal(k_x, (2, 3, 16, 16), jnp.float32)  # NCHW

    y = model(x)
    y = jax.block_until_ready(y)

    # Reference check with XLA's conv (NCHW / OIHW).
    y_ref = jax.lax.conv_general_dilated(
        x, model.weight, window_strides=(1, 1), padding="VALID",
        dimension_numbers=("NCHW", "OIHW", "NCHW"),
    ) + model.bias.reshape(1, -1, 1, 1)

    assert y.shape == (2, 6, 14, 14), y.shape
    assert jnp.allclose(y, y_ref, atol=1e-5, rtol=1e-5)
    print("KERNEL_OK")
</pallas_src>

<mosaic_0001>
module attributes {stable_mosaic.version = 11 : i64} {
  func.func @kernel(%arg0: i32, %arg1: memref<27x256xf32, #tpu.memory_space<vmem>>, %arg2: memref<6x27xf32, #tpu.memory_space<vmem>>, %arg3: memref<6x1xf32, #tpu.memory_space<vmem>>, %arg4: memref<6x256xf32, #tpu.memory_space<vmem>>) attributes {dimension_semantics = [#tpu.dimension_semantics<parallel>], iteration_bounds = array<i64: 2>, scalar_prefetch = 0 : i64, scratch_operands = 0 : i64, tpu.core_type = #tpu.core_type<tc>, window_params = [{transform_indices = @transform_0, window_bounds = array<i64: 27, 256>}, {pipeline_mode = #tpu.pipeline_mode<synchronous>, transform_indices = @transform_1, window_bounds = array<i64: 6, 27>}, {pipeline_mode = #tpu.pipeline_mode<synchronous>, transform_indices = @transform_2, window_bounds = array<i64: 6, 1>}, {transform_indices = @transform_3, window_bounds = array<i64: 6, 256>}]} {
    %c0 = arith.constant 0 : index
    %c0_0 = arith.constant 0 : index
    %0 = vector.load %arg2[%c0, %c0_0] : memref<6x27xf32, #tpu.memory_space<vmem>>, vector<6x27xf32>
    %c0_1 = arith.constant 0 : index
    %c0_2 = arith.constant 0 : index
    %1 = vector.load %arg1[%c0_1, %c0_2] : memref<27x256xf32, #tpu.memory_space<vmem>>, vector<27x256xf32>
    %cst = arith.constant dense<0.000000e+00> : vector<6x256xf32>
    %2 = tpu.matmul %0, %1, %cst {dimension_numbers = #tpu.dot_dimension_numbers<[1], [0], [0], [1], [0, 0, 1, 1], [], []>} : vector<6x27xf32>, vector<27x256xf32>, vector<6x256xf32> -> vector<6x256xf32>
    %c0_3 = arith.constant 0 : index
    %c0_4 = arith.constant 0 : index
    %3 = vector.load %arg3[%c0_3, %c0_4] : memref<6x1xf32, #tpu.memory_space<vmem>>, vector<6x1xf32>
    %4 = vector.broadcast %3 : vector<6x1xf32> to vector<6x256xf32>
    %5 = arith.addf %2, %4 : vector<6x256xf32>
    %c0_5 = arith.constant 0 : index
    %c0_6 = arith.constant 0 : index
    %6 = vector.load %arg4[%c0_5, %c0_6] : memref<6x256xf32, #tpu.memory_space<vmem>>, vector<6x256xf32>
    tpu.vector_store %arg4[%c0_5, %c0_6], %5 {strides = array<i32>} : memref<6x256xf32, #tpu.memory_space<vmem>>, vector<6x256xf32>,
    return
  }
  func.func @transform_0(%arg0: i32) -> (i32, i32) {
    %c0_i32 = arith.constant 0 : i32
    %c0_i32_0 = arith.constant 0 : i32
    return %c0_i32, %arg0 : i32, i32
  }
  func.func @transform_1(%arg0: i32) -> (i32, i32) {
    %c0_i32 = arith.constant 0 : i32
    %c0_i32_0 = arith.constant 0 : i32
    %c0_i32_1 = arith.constant 0 : i32
    return %c0_i32, %c0_i32_0 : i32, i32
  }
  func.func @transform_2(%arg0: i32) -> (i32, i32) {
    %c0_i32 = arith.constant 0 : i32
    %c0_i32_0 = arith.constant 0 : i32
    %c0_i32_1 = arith.constant 0 : i32
    return %c0_i32, %c0_i32_0 : i32, i32
  }
  func.func @transform_3(%arg0: i32) -> (i32, i32) {
    %c0_i32 = arith.constant 0 : i32
    %c0_i32_0 = arith.constant 0 : i32
    return %c0_i32, %arg0 : i32, i32
  }
}

</mosaic_0001>

<llo_original>
// kernel: tpu_custom_call.1
$region0: #{tpu_custom_call.1}
  #allocation0 [shape = 'u32[]', space=smem, size = 0x4, offset = 0x4, fixed_abs, tag = 'smem constant byte address 0x4 - core index']
  #allocation1 [shape = 'u32[144,128]{1,0:T(1,128)}', space=vmem, size = 0x12000, scoped, tag = 'internal scratch']
  %s0 = inlined_call_operand.hbm [shape: f32[27,512], index: 0, kind: input, shape index: {}]
  %s1 = inlined_call_operand.vmem [shape: f32[6,27], index: 1, kind: input, shape index: {}]
  %s2 = inlined_call_operand.vmem [shape: f32[6,1], index: 2, kind: input, shape index: {}]
  %s3 = inlined_call_operand.hbm [shape: f32[6,512], index: 3, kind: output, shape index: {}]
  %s4 = sld [smem:[#allocation0]]
  $region49: #{tpu_custom_call.1} parent=0
    _
  %s6 = ssub.s32 1, %s4
  %s7 = scalar_select 0, %s6, %s4
  $region1: #{tpu_custom_call.1} parent=0
    #allocation2 [shape = 'u8[65536]{0}', space=vmem, size = 0x10000, scoped, tag = 'input window, operand 0']
    #allocation3 [shape = 's32[2]{0}', space=sflag, size = 0x8, scoped, tag = 'scoped memory for tpu_custom_call.1']
    #allocation4 [shape = 's32[2]{0}', space=sflag, size = 0x8, scoped, tag = 'scoped memory for tpu_custom_call.1']
    #allocation5 [shape = 'u8[16384]{0}', space=vmem, size = 0x4000, scoped, tag = 'output window, operand 0']
    %8 = vsyncpa [#allocation3], 0
    %s9 = scalar_lea.sflag [#allocation3], 1
    %10 = vsyncpa %s9, 0
    %11 = vsyncpa [#allocation4], 0
    %s12 = scalar_lea.sflag [#allocation4], 1
    %13 = vsyncpa %s12, 0
    loop: start=0, step=1, limit=4
    $region2: #{tpu_custom_call.1} parent=1 // loop_pre_header
      _
    $region3: #{tpu_custom_call.1} parent=1 // loop_header
      %s15 = sphi 0, %s19
      %p16 = scmp.ge.s32.totalorder %s15, 4
      %s25 = sphi 0, %s27
      %s28 = sphi 0, %s25
      %s29 = sphi 0, %s28
      %s45 = sphi 0, %s29
      %s49 = sphi 0, %s49
      %s51 = sphi 0, %s49
      %s52 = sphi 0, %s51
      %s66 = sphi 0, %s52
      %s70 = sphi 0, %s70
      %s72 = sphi 0, %s70
      %s73 = sphi 0, %s72
      %s87 = sphi 0, %s73
      %s93 = sphi 0, %s95
      %s96 = sphi 0, %s93
      %s97 = sphi 0, %s96
      %s113 = sphi 0, %s97
    $region4: #{tpu_custom_call.1} parent=1 // loop_header_branch
      %18 = sbr.rel (%p16) target = $region8
    $region5: #{tpu_custom_call.1} parent=1 // loop_body
      %s20 = ssub.s32 %s15, 1
      %s21 = ssub.s32 %s15, 2
      %s22 = sadd.s32 %s15, 1
      %s23 = ssub.s32 %s15, %s22
      %p24 = scmp.eq.s32.totalorder %s23, 0
      %s26 = sadd.s32 %s25, 1
      %s27 = scalar_select %p24, %s25, %s26
      %p30 = pneg %p24
      %p31 = scmp.eq.s32.totalorder %s15, 1
      %p32 = por %p30, %p31
      %p33 = scmp.ne.s32.totalorder %s25, %s28
      %p34 = scmp.eq.s32.totalorder %s15, 0
      %p35 = por %p33, %p34
      %p36 = scmp.ne.s32.totalorder %s25, %s28
      %p37 = scmp.eq.s32.totalorder %s20, 1
      %p38 = por %p36, %p37
      %p39 = scmp.ne.s32.totalorder %s28, %s29
      %p40 = scmp.eq.s32.totalorder %s20, 0
      %p41 = por %p39, %p40
      %p42 = scmp.ne.s32.totalorder %s28, %s29
      %p43 = scmp.eq.s32.totalorder %s21, 1
      %p44 = por %p42, %p43
      %p46 = scmp.ne.s32.totalorder %s29, %s45
      %p47 = scmp.eq.s32.totalorder %s21, 0
      %p48 = por %p46, %p47
      %s50 = sadd.s32 %s49, 1
      %p53 = scmp.eq.s32.totalorder %s15, 1
      %p54 = scmp.ne.s32.totalorder %s49, %s51
      %p55 = scmp.eq.s32.totalorder %s15, 0
      %p56 = por %p54, %p55
      %p57 = scmp.ne.s32.totalorder %s49, %s51
      %p58 = scmp.eq.s32.totalorder %s20, 1
      %p59 = por %p57, %p58
      %p60 = scmp.ne.s32.totalorder %s51, %s52
      %p61 = scmp.eq.s32.totalorder %s20, 0
      %p62 = por %p60, %p61
      %p63 = scmp.ne.s32.totalorder %s51, %s52
      %p64 = scmp.eq.s32.totalorder %s21, 1
      %p65 = por %p63, %p64
      %p67 = scmp.ne.s32.totalorder %s52, %s66
      %p68 = scmp.eq.s32.totalorder %s21, 0
      %p69 = por %p67, %p68
      %s71 = sadd.s32 %s70, 1
      %p74 = scmp.eq.s32.totalorder %s15, 1
      %p75 = scmp.ne.s32.totalorder %s70, %s72
      %p76 = scmp.eq.s32.totalorder %s15, 0
      %p77 = por %p75, %p76
      %p78 = scmp.ne.s32.totalorder %s70, %s72
      %p79 = scmp.eq.s32.totalorder %s20, 1
      %p80 = por %p78, %p79
      %p81 = scmp.ne.s32.totalorder %s72, %s73
      %p82 = scmp.eq.s32.totalorder %s20, 0
      %p83 = por %p81, %p82
      %p84 = scmp.ne.s32.totalorder %s72, %s73
      %p85 = scmp.eq.s32.totalorder %s21, 1
      %p86 = por %p84, %p85
      %p88 = scmp.ne.s32.totalorder %s73, %s87
      %p89 = scmp.eq.s32.totalorder %s21, 0
      %p90 = por %p88, %p89
      %s91 = ssub.s32 %s15, %s22
      %p92 = scmp.eq.s32.totalorder %s91, 0
      %s94 = sadd.s32 %s93, 1
      %s95 = scalar_select %p92, %s93, %s94
      %p98 = pneg %p92
      %p99 = scmp.eq.s32.totalorder %s15, 1
      %p100 = por %p98, %p99
      %p101 = scmp.ne.s32.totalorder %s93, %s96
      %p102 = scmp.eq.s32.totalorder %s15, 0
      %p103 = por %p101, %p102
      %p104 = scmp.ne.s32.totalorder %s93, %s96
      %p105 = scmp.eq.s32.totalorder %s20, 1
      %p106 = por %p104, %p105
      %p107 = scmp.ne.s32.totalorder %s96, %s97
      %p108 = scmp.eq.s32.totalorder %s20, 0
      %p109 = por %p107, %p108
      %p110 = scmp.ne.s32.totalorder %s96, %s97
      %p111 = scmp.eq.s32.totalorder %s21, 1
      %p112 = por %p110, %p111
      %p114 = scmp.ne.s32.totalorder %s97, %s113
      %p115 = scmp.eq.s32.totalorder %s21, 0
      %p116 = por %p114, %p115
      %p117 = scmp.le.s32.totalorder 1, %s15
      %p118 = scmp.lt.s32.totalorder %s15, 3
      %p119 = pnand %p117, %p118
      %p120 = pneg %p119
      // Predicated region
      $region9: #{tpu_custom_call.1} parent=5 // pred_check
        _
      $region10: #{tpu_custom_call.1} parent=5 // pred_check_branch
        %122 = sbr.rel (%p119) target = $region12
      $region11: #{tpu_custom_call.1} parent=5 // pred_region
        %s123 = ssub.s32 %s15, 1
        // Predicated region
        $region13: #{tpu_custom_call.1} parent=11 // pred_check
          %p124 = pneg %p62
        $region14: #{tpu_custom_call.1} parent=11 // pred_check_branch
          %126 = sbr.rel (%p124) target = $region16
        $region15: #{tpu_custom_call.1} parent=11 // pred_region
          _
        $region16: #{tpu_custom_call.1} parent=11 // pred_fallthru
          _
        // Predicated region
        $region17: #{tpu_custom_call.1} parent=11 // pred_check
          %p127 = pneg %p83
        $region18: #{tpu_custom_call.1} parent=11 // pred_check_branch
          %129 = sbr.rel (%p127) target = $region20
        $region19: #{tpu_custom_call.1} parent=11 // pred_region
          _
        $region20: #{tpu_custom_call.1} parent=11 // pred_fallthru
          _
      $region12: #{tpu_custom_call.1} parent=5 // pred_fallthru
        _
      %p130 = scmp.lt.s32.totalorder %s15, 2
      // Predicated region
      $region21: #{tpu_custom_call.1} parent=5 // pred_check
        %p131 = pneg %p130
      $region22: #{tpu_custom_call.1} parent=5 // pred_check_branch
        %133 = sbr.rel (%p131) target = $region24
      $region23: #{tpu_custom_call.1} parent=5 // pred_region
        // Predicated region
        $region25: #{tpu_custom_call.1} parent=23 // pred_check
          %p134 = pneg %p35
        $region26: #{tpu_custom_call.1} parent=23 // pred_check_branch
          %136 = sbr.rel (%p134) target = $region28
        $region27: #{tpu_custom_call.1} parent=23 // pred_region
          %s137 = sand.u32 %s25, 1
          %s138 = scalar_lea.sflag [#allocation3], %s137
          %s139 = sand.u32 %s25, 1
          %s140 = smul.addr %s139, 64
          %s141 = scalar_lea.vmem [#allocation2], %s140
          %s142 = smul.u32 2, %s15
          %s144 = ssub.s32 1024, 1024
          %145 = vsyncadd %s138, %s144
          %s146 = smul.addr %s142, 128
          %s147 = scalar_lea.hbm %s0, %s146
          %s148 = sshll.u32 %s141, 4
          %s149 = int_to_ptr.vmem [resolvable:$true] %s148
          %154 = dma.hbm_to_vmem [thread:$0]  %s147, 1024, %s149, %s138, 512, 256, 16
        $region28: #{tpu_custom_call.1} parent=23 // pred_fallthru
          _
      $region24: #{tpu_custom_call.1} parent=5 // pred_fallthru
        _
      %p155 = scmp.le.s32.totalorder 1, %s15
      %p156 = scmp.lt.s32.totalorder %s15, 3
      %p157 = pnand %p155, %p156
      %p158 = pneg %p157
      // Predicated region
      $region29: #{tpu_custom_call.1} parent=5 // pred_check
        _
      $region30: #{tpu_custom_call.1} parent=5 // pred_check_branch
        %160 = sbr.rel (%p157) target = $region32
      $region31: #{tpu_custom_call.1} parent=5 // pred_region
        %s161 = ssub.s32 %s15, 1
        %s162 = sand.u32 %s28, 1
        %s163 = scalar_lea.sflag [#allocation3], %s162
        %s164 = sand.u32 %s28, 1
        %s165 = smul.addr %s164, 64
        %s166 = scalar_lea.vmem [#allocation2], %s165
        // Predicated region
        $region33: #{tpu_custom_call.1} parent=31 // pred_check
          %p167 = pneg %p41
        $region34: #{tpu_custom_call.1} parent=31 // pred_check_branch
          %169 = sbr.rel (%p167) target = $region36
        $region35: #{tpu_custom_call.1} parent=31 // pred_region
          %170 = dma.done %s163, 1024
        $region36: #{tpu_custom_call.1} parent=31 // pred_fallthru
          _
        %s171 = sand.u32 %s28, 1
        %s172 = scalar_lea.sflag [#allocation3], %s171
        %s173 = sand.u32 %s28, 1
        %s174 = smul.addr %s173, 64
        %s175 = scalar_lea.vmem [#allocation2], %s174
        %p176 = pneg %p41
        %p177 = pneg %p38
        %p178 = pneg %p62
        %p179 = pneg %p59
        %p180 = pneg %p83
        %p181 = pneg %p80
        %p182 = pneg %p109
        %p183 = pneg %p106
        %s184 = sand.u32 %s96, 1
        %s185 = scalar_lea.sflag [#allocation4], %s184
        %s186 = sand.u32 %s96, 1
        %s187 = smul.addr %s186, 16
        %s188 = scalar_lea.vmem [#allocation5], %s187
        %s189 = smul.u32 2, %s20
        %s190 = smul.u32 2, %s20
        %v191 = vld [vmem:[%s1] sm:$0x3f]
        %v192 = vld [vmem:[%s166] sm:$0xff]
        %v193 = vld [vmem:[%s166 + $0x8] sm:$0xff]
        %v194 = vld [vmem:[%s166 + $0x10] sm:$0xff]
        %v195 = vld [vmem:[%s166 + $0x18] sm:$0xff]
        %v196 = vld [vmem:[%s166 + $0x20] sm:$0xff]
        %v197 = vld [vmem:[%s166 + $0x28] sm:$0xff]
        %v198 = vld [vmem:[%s166 + $0x30] sm:$0x7]
        %v199 = vld [vmem:[%s166 + $0x38] sm:$0x7]
        %v200 = vld [vmem:[%s2] sm:$0x3f]
        %202 = vset.pattern.permute.xlu0 0
        %203 = vperm.xlu0 %202, %v200
        %v204 = vpop.permute.xlu0 %203
        %vm206 = vcmask 220160
        %v208 = vsel %vm206, %v191, 0
        %vm210 = vcmask 1042432
        %v212 = vsel %vm210, %v198, 0
        %v215 = vsel %vm210, %v199, 0
        %217 = vmatprep.subr.mxu0 0.0
        %218 = vmatpush1.msra.mxu0 0.0
        %219 = vmatprep.subr.mxu0 0.0
        %220 = vmatpush1.msra.mxu0 0.0
        %221 = vmatprep.subr.mxu0 0.0
        %222 = vmatpush1.msra.mxu0 0.0
        %223 = vmatprep.subr.mxu0 0.0
        %224 = vmatpush1.msra.mxu0 0.0
        %225 = vmatprep.subr.mxu0 0.0
        %226 = vmatpush1.msra.mxu0 0.0
        %227 = vmatprep.subr.mxu0 0.0
        %228 = vmatpush1.msra.mxu0 0.0
        %229 = vmatprep.subr.mxu0 0.0
        %230 = vmatpush1.msra.mxu0 0.0
        %231 = vmatprep.subr.mxu0 0.0
        %232 = vmatpush1.msra.mxu0 0.0
        %233 = vmatprep.subr.mxu0 0.0
        %234 = vmatpush1.msra.mxu0 0.0
        %235 = vmatprep.subr.mxu0 0.0
        %236 = vmatpush1.msra.mxu0 0.0
        %237 = vmatprep.subr.mxu0 0.0
        %238 = vmatpush1.msra.mxu0 0.0
        %239 = vmatprep.subr.mxu0 0.0
        %240 = vmatpush1.msra.mxu0 0.0
        %241 = vmatprep.subr.mxu0 %v215
        %242 = vmatpush1.msra.mxu0 %v212
        %243 = vmatprep.subr.mxu0 %v197
        %244 = vmatpush1.msra.mxu0 %v196
        %245 = vmatprep.subr.mxu0 %v195
        %246 = vmatpush1.msra.mxu0 %v194
        %247 = vmatprep.subr.mxu0 %v193
        %248 = vmatpush1.msra.mxu0 %v192
        %249 = vmatprep.subr.mxu0 0.0
        %250 = vmatpush2.msra.mxu0 0.0
        %251 = vmatprep.subr.mxu0 0.0
        %252 = vmatpush2.msra.mxu0 0.0
        %253 = vmatprep.subr.mxu0 0.0
        %254 = vmatpush2.msra.mxu0 0.0
        %255 = vmatprep.subr.mxu0 0.0
        %256 = vmatpush2.msra.mxu0 0.0
        %257 = vmatprep.subr.mxu0 0.0
        %258 = vmatpush2.msra.mxu0 0.0
        %259 = vmatprep.subr.mxu0 0.0
        %260 = vmatpush2.msra.mxu0 0.0
        %261 = vmatprep.subr.mxu0 0.0
        %262 = vmatpush2.msra.mxu0 0.0
        %263 = vmatprep.subr.mxu0 0.0
        %264 = vmatpush2.msra.mxu0 0.0
        %265 = vmatprep.subr.mxu0 0.0
        %266 = vmatpush2.msra.mxu0 0.0
        %267 = vmatprep.subr.mxu0 0.0
        %268 = vmatpush2.msra.mxu0 0.0
        %269 = vmatprep.subr.mxu0 0.0
        %270 = vmatpush2.msra.mxu0 0.0
        %271 = vmatprep.subr.mxu0 0.0
        %272 = vmatpush2.msra.mxu0 0.0
        %273 = vmatprep.subr.mxu0 0.0
        %274 = vmatpush2.msra.mxu0 0.0
        %275 = vmatprep.subr.mxu0 0.0
        %276 = vmatpush2.msra.mxu0 0.0
        %277 = vmatprep.subr.mxu0 0.0
        %278 = vmatpush2.msra.mxu0 0.0
        %279 = vmatprep.subr.mxu0 0.0
        %280 = vmatpush2.msra.mxu0 0.0
        %281 = vmatprep.mubr.f32.mxu0 0.0
        %282 = vmatmul.mubr.f32.gmra.mxu0 %v208
        %v283 = vpop.f32.mrf.mxu0
        %v284 = vadd.f32 %v204, %v283
        %v285 = vpop.f32.mrf.mxu0
        %v286 = vadd.f32 %v204, %v285
        %287 = vdwg.mxu0
        %288 = vst [vmem:[%s188] sm:$0x3f] %v284
        %289 = vst [vmem:[%s188 + $0x8] sm:$0x3f] %v286
        %s290 = sand.u32 %s96, 1
        %s291 = scalar_lea.sflag [#allocation4], %s290
        %s292 = sand.u32 %s96, 1
        %s293 = smul.addr %s292, 16
        %s294 = scalar_lea.vmem [#allocation5], %s293
        // Predicated region
        $region37: #{tpu_custom_call.1} parent=31 // pred_check
          %p295 = pneg %p106
        $region38: #{tpu_custom_call.1} parent=31 // pred_check_branch
          %297 = sbr.rel (%p295) target = $region40
        $region39: #{tpu_custom_call.1} parent=31 // pred_region
          %s298 = smul.u32 2, %s20
          %s300 = ssub.s32 256, 256
          %301 = vsyncadd %s291, %s300
          %s302 = smul.addr %s298, 128
          %s303 = scalar_lea.hbm %s3, %s302
          %s305 = sshll.u32 %s294, 4
          %s306 = int_to_ptr.vmem [resolvable:$true] %s305
          %308 = dma.vmem_to_hbm [thread:$0]  %s306, 256, %s303, %s291
        $region40: #{tpu_custom_call.1} parent=31 // pred_fallthru
          _
      $region32: #{tpu_custom_call.1} parent=5 // pred_fallthru
        _
      %p309 = scmp.le.s32.totalorder 2, %s15
      // Predicated region
      $region41: #{tpu_custom_call.1} parent=5 // pred_check
        %p310 = pneg %p309
      $region42: #{tpu_custom_call.1} parent=5 // pred_check_branch
        %312 = sbr.rel (%p310) target = $region44
      $region43: #{tpu_custom_call.1} parent=5 // pred_region
        %s313 = ssub.s32 %s15, 2
        // Predicated region
        $region45: #{tpu_custom_call.1} parent=43 // pred_check
          %p314 = pneg %p112
        $region46: #{tpu_custom_call.1} parent=43 // pred_check_branch
          %316 = sbr.rel (%p314) target = $region48
        $region47: #{tpu_custom_call.1} parent=43 // pred_region
          %s317 = sand.u32 %s97, 1
          %s318 = scalar_lea.sflag [#allocation4], %s317
          %s319 = sand.u32 %s97, 1
          %s320 = smul.addr %s319, 16
          %s321 = scalar_lea.vmem [#allocation5], %s320
          %322 = dma.done %s318, 256
        $region48: #{tpu_custom_call.1} parent=43 // pred_fallthru
          _
      $region44: #{tpu_custom_call.1} parent=5 // pred_fallthru
        _
    $region6: #{tpu_custom_call.1} parent=1 // loop_footer
      %s19 = sadd.s32 1, %s15
    $region7: #{tpu_custom_call.1} parent=1 // loop_footer_branch
      %14 = sbr.rel target = $region3
    $region8: #{tpu_custom_call.1} parent=1 // loop_exit
      _
    %323 = vsyncpa [#allocation3], 1
    %s324 = scalar_lea.sflag [#allocation3], 1
    %325 = vsyncpa %s324, 1
    %326 = vsyncpa [#allocation4], 1
    %s327 = scalar_lea.sflag [#allocation4], 1
    %328 = vsyncpa %s327, 1

</llo_original>
